<compile_context>
chip_gen: v7x
topology: tpu7x:2x2x1
jax: 0.10.0
libtpu: 0.0.40
codegen_flags: <defaults>
</compile_context>

<pallas_src>
import functools

import jax
import jax.numpy as jnp
from jax import lax
from jax.experimental import pallas as pl
from jax.experimental.pallas import tpu as pltpu


def _round8(x):
    return ((x + 7) // 8) * 8


def _param_layout(state_size, action_size, units):
    """Row offsets (8-aligned so every slice is sublane-aligned) of each
    parameter inside the single packed (R, C) f32 buffer."""
    sf = state_size - 1
    C = max(units, action_size)
    o = {}
    o["w1"] = 0                               # (sf, units)
    o["b1"] = _round8(sf)                     # (1, units)
    o["wl"] = o["b1"] + 8                     # (units, action_size)
    o["bl"] = o["wl"] + _round8(units)        # (1, action_size)
    o["ww1"] = o["bl"] + 8                    # (2, units)
    o["bw1"] = o["ww1"] + 8                   # (1, units)
    o["ww2"] = o["bw1"] + 8                   # (1, units)  fcw2 weight, stored transposed
    o["bw2"] = o["ww2"] + 8                   # (1, 1)
    R = o["bw2"] + 8
    return o, R, C


def pack_params(params, *, state_size, action_size, units):
    """Concatenate all parameters into one (R, C) f32 buffer (built once)."""
    o, R, C = _param_layout(state_size, action_size, units)
    buf = jnp.zeros((R, C), jnp.float32)

    def place(b, row, arr):
        r, c = arr.shape
        return b.at[row:row + r, :c].set(arr.astype(jnp.float32))

    buf = place(buf, o["w1"], params["w1"])
    buf = place(buf, o["b1"], params["b1"])
    buf = place(buf, o["wl"], params["wl"])
    buf = place(buf, o["bl"], params["bl"])
    buf = place(buf, o["ww1"], params["ww1"])
    buf = place(buf, o["bw1"], params["bw1"])
    buf = place(buf, o["ww2"], params["ww2"].T)   # (units,1) -> (1,units) row
    buf = place(buf, o["bw2"], params["bw2"])
    return buf


def _actor_kernel(state_ref, p_ref, out_ref, *, state_size, action_size, units):
    sf = state_size - 1          # fc1 input features
    af = action_size - 1         # main-branch action features
    o, _, _ = _param_layout(state_size, action_size, units)

    s = state_ref[...]                                    # (bm, state_size)

    # Static slices of the packed VMEM params buffer (no extra DMAs).
    w1 = p_ref[o["w1"]:o["w1"] + sf, :units]              # (sf, units)
    b1 = p_ref[o["b1"]:o["b1"] + 1, :units]               # (1, units)
    wl = p_ref[o["wl"]:o["wl"] + units, :action_size]     # (units, action_size)
    bl = p_ref[o["bl"]:o["bl"] + 1, :action_size]         # (1, action_size)
    ww1 = p_ref[o["ww1"]:o["ww1"] + 2, :units]            # (2, units)
    bw1 = p_ref[o["bw1"]:o["bw1"] + 1, :units]            # (1, units)
    ww2 = p_ref[o["ww2"]:o["ww2"] + 1, :units]            # (1, units) (transposed)
    bw2 = p_ref[o["bw2"]:o["bw2"] + 1, 0:1]               # (1, 1)

    # x = tanh(fc1(state[:, :state_size-1]))
    x = jnp.tanh(jnp.dot(s[:, :sf], w1, preferred_element_type=jnp.float32) + b1)
    # x = sigmoid(fc_last(x))                              (layer == 1 path)
    x = jax.nn.sigmoid(jnp.dot(x, wl, preferred_element_type=jnp.float32) + bl)

    # aw = tanh(fcw1(cat([state[:, -1:], x[:, -1:]], 1)))
    # K=2 matmul expanded as two rank-1 broadcast MACs (no MXU op, no concat).
    col_s = s[:, sf:sf + 1]                               # (bm, 1)
    col_x = x[:, af:af + 1]                               # (bm, 1)
    h = jnp.tanh(col_s * ww1[0:1, :] + col_x * ww1[1:2, :] + bw1)

    # aw = sigmoid(fcw2(aw)) — (bm,units)x(units,1) done as VPU mul + XLU lane
    # reduce instead of an N=1 MXU matmul.
    aw = jax.nn.sigmoid(jnp.sum(h * ww2, axis=-1, keepdims=True) + bw2)

    # act = cat([x[:, :action_size-1], aw], 1) — assembled in registers and
    # written with a single full-block store.
    lane = lax.broadcasted_iota(jnp.int32, x.shape, 1)
    out_ref[...] = jnp.where(lane < af, x, aw)


def actor_forward(state, packed_params, *, state_size, action_size, units,
                  block_rows=None):
    """Actor forward (layer == 1). state: (B, state_size) f32,
    packed_params: pack_params() output. Returns (B, action_size) f32."""
    B = state.shape[0]
    _, R, C = _param_layout(state_size, action_size, units)
    sf = state_size - 1

    if block_rows is None:
        block_rows = min(512, _round8(B))
    block_rows = max(8, _round8(block_rows))

    Bp = pl.cdiv(B, block_rows) * block_rows
    if Bp != B:
        state = jnp.pad(state, ((0, Bp - B), (0, 0)))
    grid = (Bp // block_rows,)

    kernel = functools.partial(_actor_kernel, state_size=state_size,
                               action_size=action_size, units=units)

    cost = pl.CostEstimate(
        flops=2 * Bp * (sf * units + units * action_size + 2 * units + units),
        transcendentals=Bp * (2 * units + action_size + 1),
        bytes_accessed=4 * (Bp * state_size + R * C + Bp * action_size),
    )

    out = pl.pallas_call(
        kernel,
        out_shape=jax.ShapeDtypeStruct((Bp, action_size), jnp.float32),
        grid=grid,
        in_specs=[
            pl.BlockSpec((block_rows, state_size), lambda i: (i, 0)),
            pl.BlockSpec((R, C), lambda i: (0, 0)),   # params resident across grid
        ],
        out_specs=pl.BlockSpec((block_rows, action_size), lambda i: (i, 0)),
        compiler_params=pltpu.CompilerParams(dimension_semantics=("parallel",)),
        cost_estimate=cost,
    )(state, packed_params)
    return out[:B]


def init_params(key, state_size, action_size, units):
    """Deterministic init mimicking nn.Linear default (U[-1/sqrt(fan_in), +])."""
    def linear(k, fan_in, fan_out):
        kw, kb = jax.random.split(k)
        bound = 1.0 / jnp.sqrt(jnp.float32(fan_in))
        w = jax.random.uniform(kw, (fan_in, fan_out), jnp.float32, -bound, bound)
        b = jax.random.uniform(kb, (1, fan_out), jnp.float32, -bound, bound)
        return w, b

    k1, k2, k3, k4 = jax.random.split(key, 4)
    w1, b1 = linear(k1, state_size - 1, units)     # fc1
    wl, bl = linear(k2, units, action_size)        # fc_last
    ww1, bw1 = linear(k3, 2, units)                # fcw1
    ww2, bw2 = linear(k4, units, 1)                # fcw2
    return dict(w1=w1, b1=b1, wl=wl, bl=bl, ww1=ww1, bw1=bw1, ww2=ww2, bw2=bw2)


def actor_reference(state, params, *, state_size, action_size):
    """Pure-JAX reference of the PyTorch forward (layer == 1)."""
    sf, af = state_size - 1, action_size - 1
    x = jnp.tanh(state[:, :sf] @ params["w1"] + params["b1"])
    x = jax.nn.sigmoid(x @ params["wl"] + params["bl"])
    aw = jnp.concatenate([state[:, sf:], x[:, af:]], axis=1)
    aw = jnp.tanh(aw @ params["ww1"] + params["bw1"])
    aw = jax.nn.sigmoid(aw @ params["ww2"] + params["bw2"])
    return jnp.concatenate([x[:, :af], aw], axis=1)


if __name__ == "__main__":
    # Small shapes consistent with the module's forward (layer == 1 default).
    B, STATE_SIZE, ACTION_SIZE, UNITS = 8, 9, 4, 32
    # TODO(synk): layer>1 variants (fc2/fc3) not exercised; layer=1 default path
    # implemented. Kernel assumes state_size >= 2 and action_size >= 2.

    key = jax.random.PRNGKey(0)
    k_state, k_params, k_state2 = jax.random.split(key, 3)
    state = jax.random.normal(k_state, (B, STATE_SIZE), jnp.float32)
    params = init_params(k_params, STATE_SIZE, ACTION_SIZE, UNITS)
    packed = pack_params(params, state_size=STATE_SIZE,
                         action_size=ACTION_SIZE, units=UNITS)

    out = actor_forward(state, packed, state_size=STATE_SIZE,
                        action_size=ACTION_SIZE, units=UNITS)
    out = jax.block_until_ready(out)
    ref = actor_reference(state, params,
                          state_size=STATE_SIZE, action_size=ACTION_SIZE)
    assert out.shape == (B, ACTION_SIZE)
    assert jnp.allclose(out, ref, atol=1e-5, rtol=1e-5), "mismatch vs reference"

    # Exercise the multi-block grid + row-padding path (grid > 1, B not % 8).
    B2 = 37
    state2 = jax.random.normal(k_state2, (B2, STATE_SIZE), jnp.float32)
    out2 = actor_forward(state2, packed, state_size=STATE_SIZE,
                         action_size=ACTION_SIZE, units=UNITS, block_rows=8)
    out2 = jax.block_until_ready(out2)
    ref2 = actor_reference(state2, params,
                           state_size=STATE_SIZE, action_size=ACTION_SIZE)
    assert out2.shape == (B2, ACTION_SIZE)
    assert jnp.allclose(out2, ref2, atol=1e-5, rtol=1e-5), "mismatch vs reference (grid)"

    print("KERNEL_OK")
</pallas_src>

<mosaic_0001>
module attributes {stable_mosaic.version = 11 : i64} {
  func.func @_actor_kernel(%arg0: i32, %arg1: memref<8x9xf32, #tpu.memory_space<vmem>>, %arg2: memref<88x32xf32, #tpu.memory_space<vmem>>, %arg3: memref<8x4xf32, #tpu.memory_space<vmem>>) attributes {dimension_semantics = [#tpu.dimension_semantics<parallel>], iteration_bounds = array<i64: 1>, scalar_prefetch = 0 : i64, scratch_operands = 0 : i64, tpu.core_type = #tpu.core_type<tc>, window_params = [{transform_indices = @transform_0, window_bounds = array<i64: 8, 9>}, {pipeline_mode = #tpu.pipeline_mode<synchronous>, transform_indices = @transform_1, window_bounds = array<i64: 88, 32>}, {transform_indices = @transform_2, window_bounds = array<i64: 8, 4>}]} {
    %c0 = arith.constant 0 : index
    %c0_0 = arith.constant 0 : index
    %0 = vector.load %arg1[%c0, %c0_0] : memref<8x9xf32, #tpu.memory_space<vmem>>, vector<8x9xf32>
    %c0_1 = arith.constant 0 : index
    %c0_2 = arith.constant 0 : index
    %1 = vector.load %arg2[%c0_1, %c0_2] : memref<88x32xf32, #tpu.memory_space<vmem>>, vector<8x32xf32>
    %c8 = arith.constant 8 : index
    %c0_3 = arith.constant 0 : index
    %2 = vector.load %arg2[%c8, %c0_3] : memref<88x32xf32, #tpu.memory_space<vmem>>, vector<1x32xf32>
    %c16 = arith.constant 16 : index
    %c0_4 = arith.constant 0 : index
    %3 = vector.load %arg2[%c16, %c0_4] : memref<88x32xf32, #tpu.memory_space<vmem>>, vector<32x4xf32>
    %c48 = arith.constant 48 : index
    %c0_5 = arith.constant 0 : index
    %4 = vector.load %arg2[%c48, %c0_5] : memref<88x32xf32, #tpu.memory_space<vmem>>, vector<1x4xf32>
    %c56 = arith.constant 56 : index
    %c0_6 = arith.constant 0 : index
    %5 = vector.load %arg2[%c56, %c0_6] : memref<88x32xf32, #tpu.memory_space<vmem>>, vector<2x32xf32>
    %c64 = arith.constant 64 : index
    %c0_7 = arith.constant 0 : index
    %6 = vector.load %arg2[%c64, %c0_7] : memref<88x32xf32, #tpu.memory_space<vmem>>, vector<1x32xf32>
    %c72 = arith.constant 72 : index
    %c0_8 = arith.constant 0 : index
    %7 = vector.load %arg2[%c72, %c0_8] : memref<88x32xf32, #tpu.memory_space<vmem>>, vector<1x32xf32>
    %c80 = arith.constant 80 : index
    %c0_9 = arith.constant 0 : index
    %8 = vector.load %arg2[%c80, %c0_9] : memref<88x32xf32, #tpu.memory_space<vmem>>, vector<1x1xf32>
    %9 = vector.extract_strided_slice %0 {offsets = [0, 0], sizes = [8, 8], strides = [1, 1]} : vector<8x9xf32> to vector<8x8xf32>
    %cst = arith.constant dense<0.000000e+00> : vector<8x32xf32>
    %10 = tpu.matmul %9, %1, %cst {dimension_numbers = #tpu.dot_dimension_numbers<[1], [0], [0], [1], [0, 0, 1, 1], [], []>} : vector<8x8xf32>, vector<8x32xf32>, vector<8x32xf32> -> vector<8x32xf32>
    %11 = vector.broadcast %2 : vector<1x32xf32> to vector<8x32xf32>
    %12 = arith.addf %10, %11 : vector<8x32xf32>
    %13 = math.tanh %12 : vector<8x32xf32>
    %cst_10 = arith.constant dense<0.000000e+00> : vector<8x4xf32>
    %14 = tpu.matmul %13, %3, %cst_10 {dimension_numbers = #tpu.dot_dimension_numbers<[1], [0], [0], [1], [0, 0, 1, 1], [], []>} : vector<8x32xf32>, vector<32x4xf32>, vector<8x4xf32> -> vector<8x4xf32>
    %15 = vector.broadcast %4 : vector<1x4xf32> to vector<8x4xf32>
    %16 = arith.addf %14, %15 : vector<8x4xf32>
    %17 = arith.negf %16 : vector<8x4xf32>
    %18 = math.exp %17 : vector<8x4xf32>
    %cst_11 = arith.constant 1.000000e+00 : f32
    %19 = vector.broadcast %cst_11 : f32 to vector<8x4xf32>
    %20 = arith.addf %19, %18 : vector<8x4xf32>
    %21 = arith.divf %19, %20 : vector<8x4xf32>
    %22 = vector.extract_strided_slice %0 {offsets = [0, 8], sizes = [8, 1], strides = [1, 1]} : vector<8x9xf32> to vector<8x1xf32>
    %23 = vector.extract_strided_slice %21 {offsets = [0, 3], sizes = [8, 1], strides = [1, 1]} : vector<8x4xf32> to vector<8x1xf32>
    %24 = vector.extract_strided_slice %5 {offsets = [0, 0], sizes = [1, 32], strides = [1, 1]} : vector<2x32xf32> to vector<1x32xf32>
    %25 = vector.broadcast %22 : vector<8x1xf32> to vector<8x32xf32>
    %26 = vector.broadcast %24 : vector<1x32xf32> to vector<8x32xf32>
    %27 = arith.mulf %25, %26 : vector<8x32xf32>
    %28 = vector.extract_strided_slice %5 {offsets = [1, 0], sizes = [1, 32], strides = [1, 1]} : vector<2x32xf32> to vector<1x32xf32>
    %29 = vector.broadcast %23 : vector<8x1xf32> to vector<8x32xf32>
    %30 = vector.broadcast %28 : vector<1x32xf32> to vector<8x32xf32>
    %31 = arith.mulf %29, %30 : vector<8x32xf32>
    %32 = arith.addf %27, %31 : vector<8x32xf32>
    %33 = vector.broadcast %6 : vector<1x32xf32> to vector<8x32xf32>
    %34 = arith.addf %32, %33 : vector<8x32xf32>
    %35 = math.tanh %34 : vector<8x32xf32>
    %36 = vector.broadcast %7 : vector<1x32xf32> to vector<8x32xf32>
    %37 = arith.mulf %35, %36 : vector<8x32xf32>
    %cst_12 = arith.constant dense<0.000000e+00> : vector<8xf32>
    %38 = vector.multi_reduction <add>, %37, %cst_12 [1] : vector<8x32xf32> to vector<8xf32>
    %39 = vector.shape_cast %38 : vector<8xf32> to vector<8x1xf32>
    %40 = vector.broadcast %8 : vector<1x1xf32> to vector<8x1xf32>
    %41 = arith.addf %39, %40 : vector<8x1xf32>
    %42 = arith.negf %41 : vector<8x1xf32>
    %43 = math.exp %42 : vector<8x1xf32>
    %cst_13 = arith.constant 1.000000e+00 : f32
    %44 = vector.broadcast %cst_13 : f32 to vector<8x1xf32>
    %45 = arith.addf %44, %43 : vector<8x1xf32>
    %46 = arith.divf %44, %45 : vector<8x1xf32>
    %47 = tpu.iota {dimensions = array<i32: 1>} : vector<8x4xi32>
    %c3_i32 = arith.constant 3 : i32
    %48 = vector.broadcast %c3_i32 : i32 to vector<8x4xi32>
    %49 = arith.cmpi slt, %47, %48 : vector<8x4xi32>
    %50 = vector.shape_cast %46 : vector<8x1xf32> to vector<8x1xf32>
    %51 = vector.broadcast %50 : vector<8x1xf32> to vector<8x4xf32>
    %52 = arith.select %49, %21, %51 : vector<8x4xi1>, vector<8x4xf32>
    %c0_14 = arith.constant 0 : index
    %c0_15 = arith.constant 0 : index
    %53 = vector.load %arg3[%c0_14, %c0_15] : memref<8x4xf32, #tpu.memory_space<vmem>>, vector<8x4xf32>
    tpu.vector_store %arg3[%c0_14, %c0_15], %52 {strides = array<i32>} : memref<8x4xf32, #tpu.memory_space<vmem>>, vector<8x4xf32>,
    return
  }
  func.func @transform_0(%arg0: i32) -> (i32, i32) {
    %c0_i32 = arith.constant 0 : i32
    %c0_i32_0 = arith.constant 0 : i32
    return %arg0, %c0_i32 : i32, i32
  }
  func.func @transform_1(%arg0: i32) -> (i32, i32) {
    %c0_i32 = arith.constant 0 : i32
    %c0_i32_0 = arith.constant 0 : i32
    %c0_i32_1 = arith.constant 0 : i32
    return %c0_i32, %c0_i32_0 : i32, i32
  }
  func.func @transform_2(%arg0: i32) -> (i32, i32) {
    %c0_i32 = arith.constant 0 : i32
    %c0_i32_0 = arith.constant 0 : i32
    return %arg0, %c0_i32 : i32, i32
  }
}

</mosaic_0001>

<llo_original>
// kernel: tpu_custom_call.1
$region0: #{tpu_custom_call.1}
  #allocation0 [shape = 'u32[]', space=smem, size = 0x4, offset = 0x4, fixed_abs, tag = 'smem constant byte address 0x4 - core index']
  #allocation1 [shape = 'u32[144,128]{1,0:T(1,128)}', space=vmem, size = 0x12000, scoped, tag = 'internal scratch']
  %s0 = inlined_call_operand.vmem [shape: f32[8,9], index: 0, kind: input, shape index: {}]
  %s1 = inlined_call_operand.vmem [shape: f32[88,32], index: 1, kind: input, shape index: {}]
  %s2 = inlined_call_operand.vmem [shape: f32[8,4], index: 2, kind: output, shape index: {}]
  %s3 = sld [smem:[#allocation0]]
  $region18: #{tpu_custom_call.1} parent=0
    _
  %s5 = ssub.s32 1, %s3
  %s6 = scalar_select 0, %s5, %s3
  // Predicated region
  $region2: #{tpu_custom_call.1} parent=0 // pred_check
    _
  $region3: #{tpu_custom_call.1} parent=0 // pred_check_branch
    %8 = sbr.rel (0) target = $region5
  $region4: #{tpu_custom_call.1} parent=0 // pred_region
    _
  $region5: #{tpu_custom_call.1} parent=0 // pred_fallthru
    _
  // Predicated region
  $region6: #{tpu_custom_call.1} parent=0 // pred_check
    _
  $region7: #{tpu_custom_call.1} parent=0 // pred_check_branch
    %10 = sbr.rel (0) target = $region9
  $region8: #{tpu_custom_call.1} parent=0 // pred_region
    _
  $region9: #{tpu_custom_call.1} parent=0 // pred_fallthru
    _
  %v11 = vld [vmem:[%s0] sm:$0xff]
  %v12 = vld [vmem:[%s1] sm:$0xff]
  %v13 = vld [vmem:[%s1 + $0x8] sm:$0x1]
  %v14 = vld [vmem:[%s1 + $0x10] sm:$0xff]
  %v15 = vld [vmem:[%s1 + $0x18] sm:$0xff]
  %v16 = vld [vmem:[%s1 + $0x20] sm:$0xff]
  %v17 = vld [vmem:[%s1 + $0x28] sm:$0xff]
  %v18 = vld [vmem:[%s1 + $0x30] sm:$0x1]
  %v19 = vld [vmem:[%s1 + $0x38] sm:$0x3]
  %v20 = vld [vmem:[%s1 + $0x40] sm:$0x1]
  %v21 = vld [vmem:[%s1 + $0x48] sm:$0x1]
  %v22 = vld [vmem:[%s1 + $0x50] sm:$0x1]
  %v23 = vlaneseq
  %v24 = vshrl.u32 %v23, 7
  %v25 = vsub.s32 0, %v24
  %v26 = vrot.slane %v13, %v25
  %vm27 = vcmask 64512
  %v29 = vsel %vm27, %v11, 0
  %31 = vmatprep.subr.mxu0 0.0
  %32 = vmatpush1.msra.mxu0 %v12
  %33 = vmatprep.subr.mxu0 0.0
  %34 = vmatpush1.msra.mxu0 0.0
  %35 = vmatprep.subr.mxu0 0.0
  %36 = vmatpush1.msra.mxu0 0.0
  %37 = vmatprep.subr.mxu0 0.0
  %38 = vmatpush1.msra.mxu0 0.0
  %39 = vmatprep.subr.mxu0 0.0
  %40 = vmatpush1.msra.mxu0 0.0
  %41 = vmatprep.subr.mxu0 0.0
  %42 = vmatpush1.msra.mxu0 0.0
  %43 = vmatprep.subr.mxu0 0.0
  %44 = vmatpush1.msra.mxu0 0.0
  %45 = vmatprep.subr.mxu0 0.0
  %46 = vmatpush1.msra.mxu0 0.0
  %47 = vmatprep.subr.mxu0 0.0
  %48 = vmatpush1.msra.mxu0 0.0
  %49 = vmatprep.subr.mxu0 0.0
  %50 = vmatpush1.msra.mxu0 0.0
  %51 = vmatprep.subr.mxu0 0.0
  %52 = vmatpush1.msra.mxu0 0.0
  %53 = vmatprep.subr.mxu0 0.0
  %54 = vmatpush1.msra.mxu0 0.0
  %55 = vmatprep.subr.mxu0 0.0
  %56 = vmatpush1.msra.mxu0 0.0
  %57 = vmatprep.subr.mxu0 0.0
  %58 = vmatpush1.msra.mxu0 0.0
  %59 = vmatprep.subr.mxu0 0.0
  %60 = vmatpush1.msra.mxu0 0.0
  %61 = vmatprep.subr.mxu0 0.0
  %62 = vmatpush1.msra.mxu0 0.0
  %63 = vmatprep.subr.mxu0 0.0
  %64 = vmatpush1.msra.mxu0 0.0
  %65 = vmatprep.subr.mxu0 0.0
  %66 = vmatpush1.msra.mxu0 0.0
  %67 = vmatprep.subr.mxu0 0.0
  %68 = vmatpush1.msra.mxu0 0.0
  %69 = vmatprep.subr.mxu0 0.0
  %70 = vmatpush1.msra.mxu0 0.0
  %71 = vmatprep.subr.mxu0 0.0
  %72 = vmatpush1.msra.mxu0 0.0
  %73 = vmatprep.subr.mxu0 0.0
  %74 = vmatpush1.msra.mxu0 0.0
  %75 = vmatprep.subr.mxu0 0.0
  %76 = vmatpush1.msra.mxu0 0.0
  %77 = vmatprep.subr.mxu0 0.0
  %78 = vmatpush1.msra.mxu0 0.0
  %79 = vmatprep.subr.mxu0 0.0
  %80 = vmatpush1.msra.mxu0 0.0
  %81 = vmatprep.subr.mxu0 0.0
  %82 = vmatpush1.msra.mxu0 0.0
  %83 = vmatprep.subr.mxu0 0.0
  %84 = vmatpush1.msra.mxu0 0.0
  %85 = vmatprep.subr.mxu0 0.0
  %86 = vmatpush1.msra.mxu0 0.0
  %87 = vmatprep.subr.mxu0 0.0
  %88 = vmatpush1.msra.mxu0 0.0
  %89 = vmatprep.subr.mxu0 0.0
  %90 = vmatpush1.msra.mxu0 0.0
  %91 = vmatprep.subr.mxu0 0.0
  %92 = vmatpush1.msra.mxu0 0.0
  %93 = vmatprep.subr.mxu0 0.0
  %94 = vmatpush1.msra.mxu0 0.0
  %95 = vmatprep.mubr.f32.mxu0 0.0
  %96 = vmatmul.mubr.f32.gmra.mrb[0].mxu0 %v29
  %v97 = vpop.f32.mrb[0].mxu0
  %v98 = vadd.f32 %v26, %v97
  %v99 = vpop.f32.mrb[0].mxu0
  %100 = vdwg.mxu0
  %v101 = vtanh.pop %v98
  %v102 = vlaneseq
  %v103 = vshrl.u32 %v102, 7
  %v104 = vsub.s32 0, %v103
  %v105 = vrot.slane %v18, %v104
  %vm106 = vcmask 261120
  %v108 = vsel %vm106, %v101, 0
  %110 = vmatprep.subr.mxu0 0.0
  %111 = vmatpush1.msra.mxu0 %v14
  %112 = vmatprep.subr.mxu0 0.0
  %113 = vmatpush1.msra.mxu0 %v15
  %114 = vmatprep.subr.mxu0 0.0
  %115 = vmatpush1.msra.mxu0 %v16
  %116 = vmatprep.subr.mxu0 0.0
  %117 = vmatpush1.msra.mxu0 %v17
  %118 = vmatprep.subr.mxu0 0.0
  %119 = vmatpush1.msra.mxu0 0.0
  %120 = vmatprep.subr.mxu0 0.0
  %121 = vmatpush1.msra.mxu0 0.0
  %122 = vmatprep.subr.mxu0 0.0
  %123 = vmatpush1.msra.mxu0 0.0
  %124 = vmatprep.subr.mxu0 0.0
  %125 = vmatpush1.msra.mxu0 0.0
  %126 = vmatprep.subr.mxu0 0.0
  %127 = vmatpush1.msra.mxu0 0.0
  %128 = vmatprep.subr.mxu0 0.0
  %129 = vmatpush1.msra.mxu0 0.0
  %130 = vmatprep.subr.mxu0 0.0
  %131 = vmatpush1.msra.mxu0 0.0
  %132 = vmatprep.subr.mxu0 0.0
  %133 = vmatpush1.msra.mxu0 0.0
  %134 = vmatprep.subr.mxu0 0.0
  %135 = vmatpush1.msra.mxu0 0.0
  %136 = vmatprep.subr.mxu0 0.0
  %137 = vmatpush1.msra.mxu0 0.0
  %138 = vmatprep.subr.mxu0 0.0
  %139 = vmatpush1.msra.mxu0 0.0
  %140 = vmatprep.subr.mxu0 0.0
  %141 = vmatpush1.msra.mxu0 0.0
  %142 = vmatprep.subr.mxu0 0.0
  %143 = vmatpush1.msra.mxu0 0.0
  %144 = vmatprep.subr.mxu0 0.0
  %145 = vmatpush1.msra.mxu0 0.0
  %146 = vmatprep.subr.mxu0 0.0
  %147 = vmatpush1.msra.mxu0 0.0
  %148 = vmatprep.subr.mxu0 0.0
  %149 = vmatpush1.msra.mxu0 0.0
  %150 = vmatprep.subr.mxu0 0.0
  %151 = vmatpush1.msra.mxu0 0.0
  %152 = vmatprep.subr.mxu0 0.0
  %153 = vmatpush1.msra.mxu0 0.0
  %154 = vmatprep.subr.mxu0 0.0
  %155 = vmatpush1.msra.mxu0 0.0
  %156 = vmatprep.subr.mxu0 0.0
  %157 = vmatpush1.msra.mxu0 0.0
  %158 = vmatprep.subr.mxu0 0.0
  %159 = vmatpush1.msra.mxu0 0.0
  %160 = vmatprep.subr.mxu0 0.0
  %161 = vmatpush1.msra.mxu0 0.0
  %162 = vmatprep.subr.mxu0 0.0
  %163 = vmatpush1.msra.mxu0 0.0
  %164 = vmatprep.subr.mxu0 0.0
  %165 = vmatpush1.msra.mxu0 0.0
  %166 = vmatprep.subr.mxu0 0.0
  %167 = vmatpush1.msra.mxu0 0.0
  %168 = vmatprep.subr.mxu0 0.0
  %169 = vmatpush1.msra.mxu0 0.0
  %170 = vmatprep.subr.mxu0 0.0
  %171 = vmatpush1.msra.mxu0 0.0
  %172 = vmatprep.subr.mxu0 0.0
  %173 = vmatpush1.msra.mxu0 0.0
  %174 = vmatprep.mubr.f32.mxu0 0.0
  %175 = vmatmul.mubr.f32.gmra.mrb[0].mxu0 %v108
  %v176 = vpop.f32.mrb[0].mxu0
  %v177 = vadd.f32 %v105, %v176
  %v178 = vpop.f32.mrb[0].mxu0
  %179 = vdwg.mxu0
  %v180 = vxor.u32 %v177, 2147483648
  %v181 = vmul.f32 %v180, 1.442695
  %v182 = vpow.pop %v181
  %v183 = vadd.f32 %v182, 1.0
  %v184 = vrcp.pop %v183
  %v185 = vmul.f32 1.0, %v184
  %186 = vset.pattern.permute.xlu0 8
  %187 = vperm.xlu0 %186, %v11
  %v188 = vpop.permute.xlu0 %187
  %v190 = vlaneseq
  %v191 = vshrl.u32 %v190, 7
  %v192 = vsub.s32 0, %v191
  %v193 = vrot.slane %v19, %v192
  %v194 = vmul.f32 %v188, %v193
  %196 = vset.pattern.permute.xlu0 3
  %197 = vperm.xlu0 %196, %v185
  %v198 = vpop.permute.xlu0 %197
  %v200 = vlaneseq
  %v201 = vshrl.u32 %v200, 7
  %v202 = vsub.s32 1, %v201
  %v203 = vrot.slane %v19, %v202
  %v204 = vmul.f32 %v198, %v203
  %v205 = vadd.f32 %v194, %v204
  %v206 = vlaneseq
  %v207 = vshrl.u32 %v206, 7
  %v208 = vsub.s32 0, %v207
  %v209 = vrot.slane %v20, %v208
  %v210 = vadd.f32 %v205, %v209
  %v211 = vtanh.pop %v210
  %v212 = vlaneseq
  %v213 = vshrl.u32 %v212, 7
  %v214 = vsub.s32 0, %v213
  %v215 = vrot.slane %v21, %v214
  %v216 = vmul.f32 %v211, %v215
  %v217 = vsel %vm106, %v216, 0.0
  %218 = vadd.xlane.f32.xlu0 %v217
  %v219 = vpop.xlane.xlu0 %218
  %v220 = vlaneseq
  %v221 = vshrl.u32 %v220, 7
  %v222 = vsub.s32 0, %v221
  %v223 = vrot.slane %v22, %v222
  %v224 = vadd.f32 %v219, %v223
  %v225 = vxor.u32 %v224, 2147483648
  %v226 = vmul.f32 %v225, 1.442695
  %v227 = vpow.pop %v226
  %v228 = vadd.f32 %v227, 1.0
  %v229 = vrcp.pop %v228
  %v230 = vmul.f32 1.0, %v229
  %v231 = vlaneseq
  %v232 = vand.u32 %v231, 127
  %vm233 = vcmp.lt.s32.totalorder %v232, 3
  %235 = vset.pattern.permute.xlu0 0
  %236 = vperm.xlu0 %235, %v230
  %v237 = vpop.permute.xlu0 %236
  %v239 = vsel %vm233, %v185, %v237
  %vm240 = vcmask 31744
  %241 = vst.msk [vmem:[%s2] sm:$0xff] %vm240, %v239
  // Predicated region
  $region10: #{tpu_custom_call.1} parent=0 // pred_check
    _
  $region11: #{tpu_custom_call.1} parent=0 // pred_check_branch
    %243 = sbr.rel (0) target = $region13
  $region12: #{tpu_custom_call.1} parent=0 // pred_region
    _
  $region13: #{tpu_custom_call.1} parent=0 // pred_fallthru
    _
  // Predicated region
  $region14: #{tpu_custom_call.1} parent=0 // pred_check
    _
  $region15: #{tpu_custom_call.1} parent=0 // pred_check_branch
    %245 = sbr.rel (0) target = $region17
  $region16: #{tpu_custom_call.1} parent=0 // pred_region
    _
  $region17: #{tpu_custom_call.1} parent=0 // pred_fallthru
    _

</llo_original>
